<compile_context>
chip_gen: v5e
topology: v5e:2x2
jax: 0.10.0
libtpu: 0.0.40
codegen_flags: <defaults>
</compile_context>

<pallas_src>
import jax
import jax.numpy as jnp
from jax.experimental import pallas as pl
from jax.experimental.pallas import tpu as pltpu


def _round_up(x, m):
    return ((x + m - 1) // m) * m


def critic_kernel(x_ref, w1_ref, b1_ref, w2_ref, b2_ref, w3_ref, b3_ref, o_ref):
    # x: (in_dim, TILE_B)  -- features on sublanes, batch on lanes.
    x = x_ref[...]
    # Layer 1: (32, in_dim) @ (in_dim, TILE_B) -> (32, TILE_B), f32 accumulate.
    h1 = jnp.dot(w1_ref[...], x, preferred_element_type=jnp.float32) + b1_ref[...]
    h1 = jnp.maximum(h1, 0.0).astype(w2_ref.dtype)
    # Layer 2: (16, 32) @ (32, TILE_B) -> (16, TILE_B).
    h2 = jnp.dot(w2_ref[...], h1, preferred_element_type=jnp.float32) + b2_ref[...]
    h2 = jnp.maximum(h2, 0.0).astype(w3_ref.dtype)
    # Layer 3: (1, 16) @ (16, TILE_B) -> (1, TILE_B), lane-dense output row.
    y = jnp.dot(w3_ref[...], h2, preferred_element_type=jnp.float32)
    o_ref[...] = y + b3_ref[0, 0]          # b3 scalar from SMEM


def _choose_tile(B, in_dim, itemsize, max_tile_b, vmem_budget_bytes):
    # Per-batch-column VMEM cost: obs double-buffer (features sublane-padded)
    # + f32 output row double-buffer (sublane-padded to 8 rows).
    sub = max(8, 32 // itemsize)                       # sublane granule rows
    per_col = 2 * _round_up(in_dim, sub) * itemsize + 2 * 8 * 4
    vmem_cap = max(128, (vmem_budget_bytes // per_col) // 128 * 128)

    if B <= 256:
        # Tiny batch: one 128-multiple tile (unmasked lane-dense stores).
        return _round_up(max(B, 1), 128)
    # >= 2 tiles so v7x's two TensorCores both get work; tiles as large as the
    # VMEM budget / 4096-row cap allow (amortizes ~0.35 us per grid step).
    half = _round_up(-(-B // 2), 128)
    return max(128, min(half, max_tile_b, vmem_cap))


def critic_forward(obs, params, *, max_tile_b=4096, compute_dtype=jnp.float32,
                   vmem_budget_bytes=20 << 20):
    """obs: (B, in_dim) float32. Returns (B, 1) float32 value estimates."""
    w1, b1, w2, b2, w3, b3 = params
    B, in_dim = obs.shape
    itemsize = jnp.dtype(compute_dtype).itemsize

    tile_b = _choose_tile(B, in_dim, itemsize, max_tile_b, vmem_budget_bytes)
    b_pad = _round_up(B, tile_b)
    num_tiles = b_pad // tile_b

    # Batch-on-lanes: stream obs as (in_dim, B); pad batch to a tile multiple.
    obs_t = obs.T.astype(compute_dtype)
    if b_pad != B:
        obs_t = jnp.pad(obs_t, ((0, 0), (0, b_pad - B)))

    w1c = w1.astype(compute_dtype)
    w2c = w2.astype(compute_dtype)
    w3c = w3.astype(compute_dtype)
    b1f = b1.astype(jnp.float32)
    b2f = b2.astype(jnp.float32)
    b3f = b3.astype(jnp.float32)

    flops = 2 * b_pad * (in_dim * 32 + 32 * 16 + 16 * 1)
    bytes_accessed = (itemsize * (b_pad * in_dim + in_dim * 32 + 32 * 16 + 16)
                      + 4 * (b_pad + 32 + 16 + 1))
    cost = pl.CostEstimate(flops=flops, transcendentals=0,
                           bytes_accessed=bytes_accessed)

    grid_spec = pltpu.PrefetchScalarGridSpec(
        num_scalar_prefetch=0,
        grid=(num_tiles,),
        in_specs=[
            # obs^T: streamed & double-buffered, one batch tile per grid step.
            pl.BlockSpec((in_dim, tile_b), lambda i: (0, i)),
            # Weights/biases: constant block index -> fetched once, resident.
            pl.BlockSpec((32, in_dim), lambda i: (0, 0)),
            pl.BlockSpec((32, 1), lambda i: (0, 0)),
            pl.BlockSpec((16, 32), lambda i: (0, 0)),
            pl.BlockSpec((16, 1), lambda i: (0, 0)),
            pl.BlockSpec((1, 16), lambda i: (0, 0)),
            # b3: scalar in SMEM.
            pl.BlockSpec(memory_space=pltpu.MemorySpace.SMEM),
        ],
        # Lane-dense (1, tile_b) output row per tile (unmasked vst path).
        out_specs=pl.BlockSpec((1, tile_b), lambda i: (0, i)),
    )

    out_row = pl.pallas_call(
        critic_kernel,
        out_shape=jax.ShapeDtypeStruct((1, b_pad), jnp.float32),
        grid_spec=grid_spec,
        compiler_params=pltpu.CompilerParams(
            dimension_semantics=("parallel",),
            vmem_limit_bytes=32 * 1024 * 1024),
        cost_estimate=cost,
    )(obs_t, w1c, b1f, w2c, b2f, w3c, b3f)

    # Drop padded columns, return PyTorch-shaped (B, 1).
    return out_row.reshape(b_pad, 1)[:B]


def init_critic_params(key, in_dim):
    """PyTorch nn.Linear init & layout: W is (out_features, in_features),
    b is (out_features, 1), both U[-1/sqrt(fan_in), 1/sqrt(fan_in)]."""
    dims = [(in_dim, 32), (32, 16), (16, 1)]
    params = []
    for fan_in, fan_out in dims:
        key, kw, kb = jax.random.split(key, 3)
        bound = 1.0 / (fan_in ** 0.5)
        w = jax.random.uniform(kw, (fan_out, fan_in), jnp.float32, -bound, bound)
        b = jax.random.uniform(kb, (fan_out, 1), jnp.float32, -bound, bound)
        params.extend([w, b])
    return tuple(params)


def critic_reference(obs, params):
    """Pure-JAX reference, mirrors the PyTorch module exactly."""
    w1, b1, w2, b2, w3, b3 = params
    h1 = jnp.maximum(obs @ w1.T + b1[:, 0], 0.0)
    h2 = jnp.maximum(h1 @ w2.T + b2[:, 0], 0.0)
    return h2 @ w3.T + b3[:, 0]


if __name__ == "__main__":
    key = jax.random.PRNGKey(0)
    key, k_obs, k_obs2, k_par = jax.random.split(key, 4)

    in_dim = 8
    params = init_critic_params(k_par, in_dim)

    # Small batch -> single 128-row tile.
    batch = 4
    obs = jax.random.normal(k_obs, (batch, in_dim), dtype=jnp.float32)
    out = jax.block_until_ready(critic_forward(obs, params))
    ref = critic_reference(obs, params)
    assert out.shape == (batch, 1), out.shape
    assert jnp.allclose(out, ref, atol=1e-4, rtol=1e-4)

    # Ragged mid-size batch -> 2 tiles (pipelined, v7x dual-TC shardable) + padding.
    batch2 = 300
    obs2 = jax.random.normal(k_obs2, (batch2, in_dim), dtype=jnp.float32)
    out2 = jax.block_until_ready(critic_forward(obs2, params))
    ref2 = critic_reference(obs2, params)
    assert out2.shape == (batch2, 1), out2.shape
    assert jnp.allclose(out2, ref2, atol=1e-4, rtol=1e-4)

    # Optional bf16 obs/weight stream (v6e/v7x HBM-bandwidth win), f32 accumulate.
    out3 = jax.block_until_ready(
        critic_forward(obs2, params, compute_dtype=jnp.bfloat16))
    assert out3.shape == (batch2, 1), out3.shape
    assert jnp.allclose(out3, ref2, atol=1e-1, rtol=1e-1)

    print("KERNEL_OK")
</pallas_src>

<mosaic_0001>
module attributes {stable_mosaic.version = 11 : i64} {
  func.func @critic_kernel(%arg0: i32, %arg1: memref<8x128xf32, #tpu.memory_space<vmem>>, %arg2: memref<32x8xf32, #tpu.memory_space<vmem>>, %arg3: memref<32x1xf32, #tpu.memory_space<vmem>>, %arg4: memref<16x32xf32, #tpu.memory_space<vmem>>, %arg5: memref<16x1xf32, #tpu.memory_space<vmem>>, %arg6: memref<1x16xf32, #tpu.memory_space<vmem>>, %arg7: memref<1x1xf32, #tpu.memory_space<smem>>, %arg8: memref<1x128xf32, #tpu.memory_space<vmem>>) attributes {dimension_semantics = [#tpu.dimension_semantics<parallel>], iteration_bounds = array<i64: 1>, scalar_prefetch = 0 : i64, scratch_operands = 0 : i64, tpu.core_type = #tpu.core_type<tc>, window_params = [{transform_indices = @transform_0, window_bounds = array<i64: 8, 128>}, {pipeline_mode = #tpu.pipeline_mode<synchronous>, transform_indices = @transform_1, window_bounds = array<i64: 32, 8>}, {pipeline_mode = #tpu.pipeline_mode<synchronous>, transform_indices = @transform_2, window_bounds = array<i64: 32, 1>}, {pipeline_mode = #tpu.pipeline_mode<synchronous>, transform_indices = @transform_3, window_bounds = array<i64: 16, 32>}, {pipeline_mode = #tpu.pipeline_mode<synchronous>, transform_indices = @transform_4, window_bounds = array<i64: 16, 1>}, {pipeline_mode = #tpu.pipeline_mode<synchronous>, transform_indices = @transform_5, window_bounds = array<i64: 1, 16>}, {transform_indices = @transform_6, window_bounds = array<i64: 1, 1>}, {transform_indices = @transform_7, window_bounds = array<i64: 1, 128>}]} {
    %c0 = arith.constant 0 : index
    %c0_0 = arith.constant 0 : index
    %0 = vector.load %arg1[%c0, %c0_0] : memref<8x128xf32, #tpu.memory_space<vmem>>, vector<8x128xf32>
    %c0_1 = arith.constant 0 : index
    %c0_2 = arith.constant 0 : index
    %1 = vector.load %arg2[%c0_1, %c0_2] : memref<32x8xf32, #tpu.memory_space<vmem>>, vector<32x8xf32>
    %cst = arith.constant dense<0.000000e+00> : vector<32x128xf32>
    %2 = tpu.matmul %1, %0, %cst {dimension_numbers = #tpu.dot_dimension_numbers<[1], [0], [0], [1], [0, 0, 1, 1], [], []>} : vector<32x8xf32>, vector<8x128xf32>, vector<32x128xf32> -> vector<32x128xf32>
    %c0_3 = arith.constant 0 : index
    %c0_4 = arith.constant 0 : index
    %3 = vector.load %arg3[%c0_3, %c0_4] : memref<32x1xf32, #tpu.memory_space<vmem>>, vector<32x1xf32>
    %4 = vector.broadcast %3 : vector<32x1xf32> to vector<32x128xf32>
    %5 = arith.addf %2, %4 : vector<32x128xf32>
    %cst_5 = arith.constant 0.000000e+00 : f32
    %6 = vector.broadcast %cst_5 : f32 to vector<32x128xf32>
    %7 = arith.maximumf %5, %6 : vector<32x128xf32>
    %c0_6 = arith.constant 0 : index
    %c0_7 = arith.constant 0 : index
    %8 = vector.load %arg4[%c0_6, %c0_7] : memref<16x32xf32, #tpu.memory_space<vmem>>, vector<16x32xf32>
    %cst_8 = arith.constant dense<0.000000e+00> : vector<16x128xf32>
    %9 = tpu.matmul %8, %7, %cst_8 {dimension_numbers = #tpu.dot_dimension_numbers<[1], [0], [0], [1], [0, 0, 1, 1], [], []>} : vector<16x32xf32>, vector<32x128xf32>, vector<16x128xf32> -> vector<16x128xf32>
    %c0_9 = arith.constant 0 : index
    %c0_10 = arith.constant 0 : index
    %10 = vector.load %arg5[%c0_9, %c0_10] : memref<16x1xf32, #tpu.memory_space<vmem>>, vector<16x1xf32>
    %11 = vector.broadcast %10 : vector<16x1xf32> to vector<16x128xf32>
    %12 = arith.addf %9, %11 : vector<16x128xf32>
    %cst_11 = arith.constant 0.000000e+00 : f32
    %13 = vector.broadcast %cst_11 : f32 to vector<16x128xf32>
    %14 = arith.maximumf %12, %13 : vector<16x128xf32>
    %c0_12 = arith.constant 0 : index
    %c0_13 = arith.constant 0 : index
    %15 = vector.load %arg6[%c0_12, %c0_13] : memref<1x16xf32, #tpu.memory_space<vmem>>, vector<1x16xf32>
    %cst_14 = arith.constant dense<0.000000e+00> : vector<1x128xf32>
    %16 = tpu.matmul %15, %14, %cst_14 {dimension_numbers = #tpu.dot_dimension_numbers<[1], [0], [0], [1], [0, 0, 1, 1], [], []>} : vector<1x16xf32>, vector<16x128xf32>, vector<1x128xf32> -> vector<1x128xf32>
    %c0_15 = arith.constant 0 : index
    %c0_16 = arith.constant 0 : index
    %17 = memref.load %arg7[%c0_15, %c0_16] : memref<1x1xf32, #tpu.memory_space<smem>>
    %18 = vector.broadcast %17 : f32 to vector<1x128xf32>
    %19 = arith.addf %16, %18 : vector<1x128xf32>
    %c0_17 = arith.constant 0 : index
    %c0_18 = arith.constant 0 : index
    %20 = vector.load %arg8[%c0_17, %c0_18] : memref<1x128xf32, #tpu.memory_space<vmem>>, vector<1x128xf32>
    tpu.vector_store %arg8[%c0_17, %c0_18], %19 {strides = array<i32>} : memref<1x128xf32, #tpu.memory_space<vmem>>, vector<1x128xf32>,
    return
  }
  func.func @transform_0(%arg0: i32) -> (i32, i32) {
    %c0_i32 = arith.constant 0 : i32
    %c0_i32_0 = arith.constant 0 : i32
    return %c0_i32, %arg0 : i32, i32
  }
  func.func @transform_1(%arg0: i32) -> (i32, i32) {
    %c0_i32 = arith.constant 0 : i32
    %c0_i32_0 = arith.constant 0 : i32
    %c0_i32_1 = arith.constant 0 : i32
    return %c0_i32, %c0_i32_0 : i32, i32
  }
  func.func @transform_2(%arg0: i32) -> (i32, i32) {
    %c0_i32 = arith.constant 0 : i32
    %c0_i32_0 = arith.constant 0 : i32
    %c0_i32_1 = arith.constant 0 : i32
    return %c0_i32, %c0_i32_0 : i32, i32
  }
  func.func @transform_3(%arg0: i32) -> (i32, i32) {
    %c0_i32 = arith.constant 0 : i32
    %c0_i32_0 = arith.constant 0 : i32
    %c0_i32_1 = arith.constant 0 : i32
    return %c0_i32, %c0_i32_0 : i32, i32
  }
  func.func @transform_4(%arg0: i32) -> (i32, i32) {
    %c0_i32 = arith.constant 0 : i32
    %c0_i32_0 = arith.constant 0 : i32
    %c0_i32_1 = arith.constant 0 : i32
    return %c0_i32, %c0_i32_0 : i32, i32
  }
  func.func @transform_5(%arg0: i32) -> (i32, i32) {
    %c0_i32 = arith.constant 0 : i32
    %c0_i32_0 = arith.constant 0 : i32
    %c0_i32_1 = arith.constant 0 : i32
    return %c0_i32, %c0_i32_0 : i32, i32
  }
  func.func @transform_6(%arg0: i32) -> (i32, i32) {
    %c0_i32 = arith.constant 0 : i32
    %c0_i32_0 = arith.constant 0 : i32
    %c0_i32_1 = arith.constant 0 : i32
    return %c0_i32, %c0_i32_0 : i32, i32
  }
  func.func @transform_7(%arg0: i32) -> (i32, i32) {
    %c0_i32 = arith.constant 0 : i32
    %c0_i32_0 = arith.constant 0 : i32
    return %c0_i32, %arg0 : i32, i32
  }
}

</mosaic_0001>

<llo_original>
// kernel: tpu_custom_call.1
$region0: #{tpu_custom_call.1}
  #allocation0 [shape = 'u32[]', space=smem, size = 0x4, offset = 0x4, fixed_abs, tag = 'smem constant byte address 0x4 - core index']
  #allocation1 [shape = 'u32[72,128]{1,0:T(1,128)}', space=vmem, size = 0x9000, scoped, tag = 'internal scratch']
  #allocation2 [shape = 'f32[1,1]{1,0:T(1,128)S(6)}', space=smem, size = 0x200, scoped, tag = 'scoped memory for tpu_custom_call.1']
  %s0 = inlined_call_operand.vmem [shape: f32[8,128], index: 0, kind: input, shape index: {}]
  %s1 = inlined_call_operand.vmem [shape: f32[32,8], index: 1, kind: input, shape index: {}]
  %s2 = inlined_call_operand.vmem [shape: f32[32,1], index: 2, kind: input, shape index: {}]
  %s3 = inlined_call_operand.vmem [shape: f32[16,32], index: 3, kind: input, shape index: {}]
  %s4 = inlined_call_operand.vmem [shape: f32[16,1], index: 4, kind: input, shape index: {}]
  %s5 = inlined_call_operand.vmem [shape: f32[1,16], index: 5, kind: input, shape index: {}]
  %s6 = inlined_call_operand.<no memory space> [shape: f32[1,1], index: 6, kind: input, shape index: {}]
  %s7 = inlined_call_operand.hbm [shape: f32[1,128], index: 7, kind: output, shape index: {}]
  %s8 = sld [smem:[#allocation0]]
  $region38: #{tpu_custom_call.1} parent=0
    _
  %s10 = ssub.s32 1, %s8
  %s11 = scalar_select 0, %s10, %s8
  %12 = sst [smem:[#allocation2]] %s6
  $region1: #{tpu_custom_call.1} parent=0
    #allocation3 [shape = 'u8[512]{0}', space=vmem, size = 0x400, scoped, tag = 'output window, operand 0, single buffered']
    #allocation4 [shape = 's32[1]{0}', space=sflag, size = 0x4, scoped, tag = 'scoped memory for tpu_custom_call.1']
    %13 = vsyncpa [#allocation4], 0
    // Predicated region
    $region2: #{tpu_custom_call.1} parent=1 // pred_check
      _
    $region3: #{tpu_custom_call.1} parent=1 // pred_check_branch
      %15 = sbr.rel (0) target = $region5
    $region4: #{tpu_custom_call.1} parent=1 // pred_region
      _
    $region5: #{tpu_custom_call.1} parent=1 // pred_fallthru
      _
    // Predicated region
    $region6: #{tpu_custom_call.1} parent=1 // pred_check
      _
    $region7: #{tpu_custom_call.1} parent=1 // pred_check_branch
      %17 = sbr.rel (0) target = $region9
    $region8: #{tpu_custom_call.1} parent=1 // pred_region
      _
    $region9: #{tpu_custom_call.1} parent=1 // pred_fallthru
      _
    // Predicated region
    $region10: #{tpu_custom_call.1} parent=1 // pred_check
      _
    $region11: #{tpu_custom_call.1} parent=1 // pred_check_branch
      %19 = sbr.rel (0) target = $region13
    $region12: #{tpu_custom_call.1} parent=1 // pred_region
      _
    $region13: #{tpu_custom_call.1} parent=1 // pred_fallthru
      _
    // Predicated region
    $region14: #{tpu_custom_call.1} parent=1 // pred_check
      _
    $region15: #{tpu_custom_call.1} parent=1 // pred_check_branch
      %21 = sbr.rel (0) target = $region17
    $region16: #{tpu_custom_call.1} parent=1 // pred_region
      _
    $region17: #{tpu_custom_call.1} parent=1 // pred_fallthru
      _
    // Predicated region
    $region18: #{tpu_custom_call.1} parent=1 // pred_check
      _
    $region19: #{tpu_custom_call.1} parent=1 // pred_check_branch
      %23 = sbr.rel (0) target = $region21
    $region20: #{tpu_custom_call.1} parent=1 // pred_region
      _
    $region21: #{tpu_custom_call.1} parent=1 // pred_fallthru
      _
    // Predicated region
    $region22: #{tpu_custom_call.1} parent=1 // pred_check
      _
    $region23: #{tpu_custom_call.1} parent=1 // pred_check_branch
      %25 = sbr.rel (0) target = $region25
    $region24: #{tpu_custom_call.1} parent=1 // pred_region
      _
    $region25: #{tpu_custom_call.1} parent=1 // pred_fallthru
      _
    // Predicated region
    $region26: #{tpu_custom_call.1} parent=1 // pred_check
      _
    $region27: #{tpu_custom_call.1} parent=1 // pred_check_branch
      %27 = sbr.rel (0) target = $region29
    $region28: #{tpu_custom_call.1} parent=1 // pred_region
      _
    $region29: #{tpu_custom_call.1} parent=1 // pred_fallthru
      _
    %v28 = vld [vmem:[%s0] sm:$0xff]
    %v29 = vld [vmem:[%s1] sm:$0xff]
    %v30 = vld [vmem:[%s1 + $0x8] sm:$0xff]
    %v31 = vld [vmem:[%s1 + $0x10] sm:$0xff]
    %v32 = vld [vmem:[%s1 + $0x18] sm:$0xff]
    %v33 = vld [vmem:[%s2] sm:$0xff]
    %v34 = vld [vmem:[%s2 + $0x8] sm:$0xff]
    %v35 = vld [vmem:[%s2 + $0x10] sm:$0xff]
    %v36 = vld [vmem:[%s2 + $0x18] sm:$0xff]
    %38 = vset.pattern.permute.xlu0 0
    %39 = vperm.xlu0 %38, %v33
    %v40 = vpop.permute.xlu0 %39
    %43 = vset.pattern.permute.xlu0 0
    %44 = vperm.xlu0 %43, %v34
    %v45 = vpop.permute.xlu0 %44
    %48 = vset.pattern.permute.xlu0 0
    %49 = vperm.xlu0 %48, %v35
    %v50 = vpop.permute.xlu0 %49
    %53 = vset.pattern.permute.xlu0 0
    %54 = vperm.xlu0 %53, %v36
    %v55 = vpop.permute.xlu0 %54
    %vm57 = vcmask 64512
    %v59 = vsel %vm57, %v29, 0
    %v62 = vsel %vm57, %v30, 0
    %v65 = vsel %vm57, %v31, 0
    %v68 = vsel %vm57, %v32, 0
    %70 = vmatpush.msra.mxu0 0.0
    %71 = vmatpush.msra.mxu0 0.0
    %72 = vmatpush.msra.mxu0 0.0
    %73 = vmatpush.msra.mxu0 0.0
    %74 = vmatpush.msra.mxu0 0.0
    %75 = vmatpush.msra.mxu0 0.0
    %76 = vmatpush.msra.mxu0 0.0
    %77 = vmatpush.msra.mxu0 0.0
    %78 = vmatpush.msra.mxu0 0.0
    %79 = vmatpush.msra.mxu0 0.0
    %80 = vmatpush.msra.mxu0 0.0
    %81 = vmatpush.msra.mxu0 0.0
    %82 = vmatpush.msra.mxu0 0.0
    %83 = vmatpush.msra.mxu0 0.0
    %84 = vmatpush.msra.mxu0 0.0
    %85 = vmatpush.msra.mxu0 %v28
    %86 = vmatmul.f32.gmra.mxu0 %v59
    %v87 = vpop.f32.mrf.mxu0
    %v88 = vadd.f32 %v40, %v87
    %89 = vmatmul.f32.gmra.mxu0 %v62
    %v90 = vpop.f32.mrf.mxu0
    %v91 = vadd.f32 %v45, %v90
    %92 = vmatmul.f32.gmra.mxu0 %v65
    %v93 = vpop.f32.mrf.mxu0
    %v94 = vadd.f32 %v50, %v93
    %95 = vmatmul.f32.gmra.mxu0 %v68
    %v96 = vpop.f32.mrf.mxu0
    %v97 = vadd.f32 %v55, %v96
    %98 = vdwg.mxu0
    %v99 = vmax.f32 %v88, 0.0
    %v100 = vmax.f32 %v91, 0.0
    %v101 = vmax.f32 %v94, 0.0
    %v102 = vmax.f32 %v97, 0.0
    %v103 = vld [vmem:[%s3] sm:$0xff]
    %v104 = vld [vmem:[%s3 + $0x8] sm:$0xff]
    %v105 = vld [vmem:[%s4] sm:$0xff]
    %v106 = vld [vmem:[%s4 + $0x8] sm:$0xff]
    %108 = vset.pattern.permute.xlu0 0
    %109 = vperm.xlu0 %108, %v105
    %v110 = vpop.permute.xlu0 %109
    %113 = vset.pattern.permute.xlu0 0
    %114 = vperm.xlu0 %113, %v106
    %v115 = vpop.permute.xlu0 %114
    %vm117 = vcmask 261120
    %v119 = vsel %vm117, %v103, 0
    %v122 = vsel %vm117, %v104, 0
    %124 = vmatpush.msra.mxu0 0.0
    %125 = vmatpush.msra.mxu0 0.0
    %126 = vmatpush.msra.mxu0 0.0
    %127 = vmatpush.msra.mxu0 0.0
    %128 = vmatpush.msra.mxu0 0.0
    %129 = vmatpush.msra.mxu0 0.0
    %130 = vmatpush.msra.mxu0 0.0
    %131 = vmatpush.msra.mxu0 0.0
    %132 = vmatpush.msra.mxu0 0.0
    %133 = vmatpush.msra.mxu0 0.0
    %134 = vmatpush.msra.mxu0 0.0
    %135 = vmatpush.msra.mxu0 0.0
    %136 = vmatpush.msra.mxu0 %v102
    %137 = vmatpush.msra.mxu0 %v101
    %138 = vmatpush.msra.mxu0 %v100
    %139 = vmatpush.msra.mxu0 %v99
    %140 = vmatmul.f32.gmra.mxu0 %v119
    %v141 = vpop.f32.mrf.mxu0
    %v142 = vadd.f32 %v110, %v141
    %143 = vmatmul.f32.gmra.mxu0 %v122
    %v144 = vpop.f32.mrf.mxu0
    %v145 = vadd.f32 %v115, %v144
    %146 = vdwg.mxu0
    %v147 = vmax.f32 %v142, 0.0
    %v148 = vmax.f32 %v145, 0.0
    %v149 = vld [vmem:[%s5] sm:$0x1]
    %s150 = sld [smem:[#allocation2]]
    %v151 = vstv %s150
    %vm152 = vcmask 130048
    %v154 = vsel %vm152, %v149, 0
    %156 = vmatpush.msra.mxu0 0.0
    %157 = vmatpush.msra.mxu0 0.0
    %158 = vmatpush.msra.mxu0 0.0
    %159 = vmatpush.msra.mxu0 0.0
    %160 = vmatpush.msra.mxu0 0.0
    %161 = vmatpush.msra.mxu0 0.0
    %162 = vmatpush.msra.mxu0 0.0
    %163 = vmatpush.msra.mxu0 0.0
    %164 = vmatpush.msra.mxu0 0.0
    %165 = vmatpush.msra.mxu0 0.0
    %166 = vmatpush.msra.mxu0 0.0
    %167 = vmatpush.msra.mxu0 0.0
    %168 = vmatpush.msra.mxu0 0.0
    %169 = vmatpush.msra.mxu0 0.0
    %170 = vmatpush.msra.mxu0 %v148
    %171 = vmatpush.msra.mxu0 %v147
    %172 = vmatmul.f32.gmra.mxu0 %v154
    %v173 = vpop.f32.mrf.mxu0
    %v174 = vadd.f32 %v151, %v173
    %175 = vdwg.mxu0
    %176 = vst [vmem:[#allocation3] sm:$0x1] %v174
    // Predicated region
    $region30: #{tpu_custom_call.1} parent=1 // pred_check
      _
    $region31: #{tpu_custom_call.1} parent=1 // pred_check_branch
      %178 = sbr.rel (0) target = $region33
    $region32: #{tpu_custom_call.1} parent=1 // pred_region
      %180 = vsyncadd [#allocation4], 0
      %s182 = sshll.u32 [#allocation3], 4
      %s183 = int_to_ptr.vmem [resolvable:$true] %s182
      %s184 = sshll.u32 %s7, 4
      %s185 = int_to_ptr.hbm [resolvable:$true] %s184
      %187 = dma.vmem_to_hbm [thread:$0]  %s183, 16, %s185, [#allocation4]
    $region33: #{tpu_custom_call.1} parent=1 // pred_fallthru
      _
    // Predicated region
    $region34: #{tpu_custom_call.1} parent=1 // pred_check
      _
    $region35: #{tpu_custom_call.1} parent=1 // pred_check_branch
      %189 = sbr.rel (0) target = $region37
    $region36: #{tpu_custom_call.1} parent=1 // pred_region
      %191 = dma.done [#allocation4], 16
    $region37: #{tpu_custom_call.1} parent=1 // pred_fallthru
      _
    %192 = vsyncpa [#allocation4], 1

</llo_original>
